<compile_context>
chip_gen: v7x
topology: tpu7x:2x2x1
jax: 0.10.0
libtpu: 0.0.40
codegen_flags: <defaults>
</compile_context>

<pallas_src>
import jax
import jax.numpy as jnp
import numpy as np
from jax.experimental import pallas as pl
from jax.experimental.pallas import tpu as pltpu
from math import floor, log2


def _round_up(x: int, m: int) -> int:
    return (x + m - 1) // m * m


def _pick_tile_b(B: int, tile_b: int) -> int:
    # Keep >= 2 grid steps when the batch allows it (v7x shards the "parallel"
    # grid axis across its 2 TensorCores); clamp to a sublane (8) multiple.
    half = _round_up(max((B + 1) // 2, 8), 8)
    return _round_up(max(min(tile_b, half), 8), 8)


def fff_kernel(x_ref, wt_ref, y_ref, o_ref):
    # x_ref  : (tB, nIn)              input tile (streamed)
    # wt_ref : (nIn, depth)           PathSelector weight (transposed), resident
    # y_ref  : (nNodes_pad, nOut)     zero-padded node table, resident
    # o_ref  : (tB, nOut)             output tile (no nOut lane padding)
    x = x_ref[...]
    wt = wt_ref[...]
    y = y_ref[...]
    tB = x.shape[0]
    depth = wt.shape[1]
    n_nodes_pad = y.shape[0]

    # (1) routing logits on the MXU (kept f32: branch decisions near 0 must not
    #     flip under a lower-precision matmul).
    lam = jnp.dot(x, wt, preferred_element_type=jnp.float32)       # (tB, depth)
    branch = (lam > 0).astype(jnp.int32)                           # (tB, depth)

    # (2) vreg-resident scatter accumulator: one distinct node id per level per
    #     row, so "+=" of lam * onehot is exactly the reference gather.
    ids = jax.lax.broadcasted_iota(jnp.int32, (tB, n_nodes_pad), 1)
    cur = jnp.zeros((tB, 1), dtype=jnp.int32)                      # root node id
    coeff = jnp.zeros((tB, n_nodes_pad), dtype=jnp.float32)
    for i in range(depth):                                         # depth small; static unroll
        coeff = coeff + lam[:, i:i + 1] * (ids == cur).astype(jnp.float32)
        cur = cur * 2 + 1 + branch[:, i:i + 1]

    # (3) y = coeff @ Y on the MXU; padded Y rows are zero and never selected.
    o_ref[...] = jnp.dot(coeff, y,
                         preferred_element_type=jnp.float32).astype(o_ref.dtype)


def fff_v2_forward(x, wt, Y, *, tile_b=512):
    """Pallas FFF_v2 forward. x: (B, nIn) or (B, S, nIn)."""
    orig_ndim = x.ndim
    nIn, depth = wt.shape
    nNodes, nOut = Y.shape

    x2 = x.reshape(-1, nIn) if orig_ndim == 3 else x
    B = x2.shape[0]

    # Pad the node axis only to the f32 sublane multiple (31 -> 32 here).
    nNodes_pad = _round_up(nNodes, 8)
    if nNodes_pad != nNodes:
        Y_pad = jnp.zeros((nNodes_pad, nOut), Y.dtype).at[:nNodes].set(Y)
    else:
        Y_pad = Y

    tb = _pick_tile_b(B, tile_b)
    grid = (pl.cdiv(B, tb),)

    # Wt and Y are grid-invariant residents (fetched once); only x streams in
    # and the output streams out.  If a trace shows exposed x DMA at very
    # large B, bump the x BlockSpec to pipeline_mode=pl.Buffered(3).
    out = pl.pallas_call(
        fff_kernel,
        out_shape=jax.ShapeDtypeStruct((B, nOut), jnp.float32),
        grid_spec=pltpu.PrefetchScalarGridSpec(
            num_scalar_prefetch=0,
            grid=grid,
            in_specs=[
                pl.BlockSpec((tb, nIn), lambda i: (i, 0)),            # x tile
                pl.BlockSpec((nIn, depth), lambda i: (0, 0)),         # Wt (resident)
                pl.BlockSpec((nNodes_pad, nOut), lambda i: (0, 0)),   # Y (resident)
            ],
            out_specs=pl.BlockSpec((tb, nOut), lambda i: (i, 0)),
        ),
        compiler_params=pltpu.CompilerParams(
            dimension_semantics=("parallel",)),
    )(x2, wt, Y_pad)

    if orig_ndim == 3:
        out = out.reshape(x.shape[0], x.shape[1], nOut)
    return out


def fff_v2_reference(x, wt, Y):
    """Pure-JAX reference matching the PyTorch forward."""
    orig_ndim = x.ndim
    nIn, depth = wt.shape
    x2 = x.reshape(-1, nIn) if orig_ndim == 3 else x
    lam = x2 @ wt                                             # (B, depth)
    branch = (lam > 0).astype(jnp.int32)
    cur = jnp.zeros(x2.shape[0], dtype=jnp.int32)
    idx_cols = []
    for i in range(depth):
        idx_cols.append(cur)
        cur = cur * 2 + 1 + branch[:, i]
    indices = jnp.stack(idx_cols, axis=1)                     # (B, depth)
    gathered = Y[indices]                                     # (B, depth, nOut)
    y = jnp.einsum('bi,bij->bj', lam, gathered)
    if orig_ndim == 3:
        y = y.reshape(x.shape[0], x.shape[1], Y.shape[1])
    return y


if __name__ == "__main__":
    nIn, nOut = 32, 64
    depth = int(floor(log2(nIn)))          # 5
    nNodes = 2 ** depth - 1                # 31

    key = jax.random.PRNGKey(0)
    k_x, k_w, k_y, k_x2 = jax.random.split(key, 4)

    # Deterministic parameter init (shapes from the module's __init__).
    # PathSelector: nn.Linear(nIn, depth, bias=False) -> weight (depth, nIn);
    # passed pre-transposed as Wt (nIn, depth).
    w = jax.random.normal(k_w, (depth, nIn), dtype=jnp.float32) * (1.0 / jnp.sqrt(nIn))
    wt = w.T
    # Y: (nNodes, nOut) rows L2-normalized (create_random_unit_vectors_of).
    Y = jax.random.normal(k_y, (nNodes, nOut), dtype=jnp.float32)
    Y = Y / jnp.linalg.norm(Y, axis=-1, keepdims=True)

    # 3-D input exercises the view()/view-back path: (B, S, nIn) = (2, 8, 32).
    x3 = jax.random.normal(k_x, (2, 8, nIn), dtype=jnp.float32)
    out3 = jax.block_until_ready(fff_v2_forward(x3, wt, Y))
    ref3 = fff_v2_reference(x3, wt, Y)
    np.testing.assert_allclose(np.asarray(out3), np.asarray(ref3), rtol=1e-5, atol=1e-5)

    # 2-D ragged batch exercises the cdiv grid (no wrapper pad) + >=2 grid steps.
    x2 = jax.random.normal(k_x2, (300, nIn), dtype=jnp.float32)
    out2 = jax.block_until_ready(fff_v2_forward(x2, wt, Y, tile_b=512))
    ref2 = fff_v2_reference(x2, wt, Y)
    np.testing.assert_allclose(np.asarray(out2), np.asarray(ref2), rtol=1e-5, atol=1e-5)

    print("KERNEL_OK")
</pallas_src>

<mosaic_0001>
module attributes {stable_mosaic.version = 11 : i64} {
  func.func @fff_kernel(%arg0: i32, %arg1: memref<8x32xf32, #tpu.memory_space<vmem>>, %arg2: memref<32x5xf32, #tpu.memory_space<vmem>>, %arg3: memref<32x64xf32, #tpu.memory_space<vmem>>, %arg4: memref<8x64xf32, #tpu.memory_space<vmem>>) attributes {dimension_semantics = [#tpu.dimension_semantics<parallel>], iteration_bounds = array<i64: 2>, scalar_prefetch = 0 : i64, scratch_operands = 0 : i64, tpu.core_type = #tpu.core_type<tc>, window_params = [{transform_indices = @transform_0, window_bounds = array<i64: 8, 32>}, {pipeline_mode = #tpu.pipeline_mode<synchronous>, transform_indices = @transform_1, window_bounds = array<i64: 32, 5>}, {pipeline_mode = #tpu.pipeline_mode<synchronous>, transform_indices = @transform_2, window_bounds = array<i64: 32, 64>}, {transform_indices = @transform_3, window_bounds = array<i64: 8, 64>}]} {
    %c0 = arith.constant 0 : index
    %c0_0 = arith.constant 0 : index
    %0 = vector.load %arg1[%c0, %c0_0] : memref<8x32xf32, #tpu.memory_space<vmem>>, vector<8x32xf32>
    %c0_1 = arith.constant 0 : index
    %c0_2 = arith.constant 0 : index
    %1 = vector.load %arg2[%c0_1, %c0_2] : memref<32x5xf32, #tpu.memory_space<vmem>>, vector<32x5xf32>
    %c0_3 = arith.constant 0 : index
    %c0_4 = arith.constant 0 : index
    %2 = vector.load %arg3[%c0_3, %c0_4] : memref<32x64xf32, #tpu.memory_space<vmem>>, vector<32x64xf32>
    %cst = arith.constant dense<0.000000e+00> : vector<8x5xf32>
    %3 = tpu.matmul %0, %1, %cst {dimension_numbers = #tpu.dot_dimension_numbers<[1], [0], [0], [1], [0, 0, 1, 1], [], []>} : vector<8x32xf32>, vector<32x5xf32>, vector<8x5xf32> -> vector<8x5xf32>
    %cst_5 = arith.constant 0.000000e+00 : f32
    %4 = vector.broadcast %cst_5 : f32 to vector<8x5xf32>
    %5 = arith.cmpf ogt, %3, %4 : vector<8x5xf32>
    %6 = arith.extui %5 : vector<8x5xi1> to vector<8x5xi32>
    %7 = tpu.iota {dimensions = array<i32: 1>} : vector<8x32xi32>
    %c0_i32 = arith.constant 0 : i32
    %8 = vector.broadcast %c0_i32 : i32 to vector<8x1xi32>
    %cst_6 = arith.constant 0.000000e+00 : f32
    %9 = vector.broadcast %cst_6 : f32 to vector<8x32xf32>
    %10 = vector.extract_strided_slice %3 {offsets = [0, 0], sizes = [8, 1], strides = [1, 1]} : vector<8x5xf32> to vector<8x1xf32>
    %11 = vector.broadcast %8 : vector<8x1xi32> to vector<8x32xi32>
    %12 = arith.cmpi eq, %7, %11 : vector<8x32xi32>
    %13 = arith.extui %12 : vector<8x32xi1> to vector<8x32xi32>
    %14 = arith.sitofp %13 : vector<8x32xi32> to vector<8x32xf32>
    %15 = vector.broadcast %10 : vector<8x1xf32> to vector<8x32xf32>
    %16 = arith.mulf %15, %14 : vector<8x32xf32>
    %17 = arith.addf %9, %16 : vector<8x32xf32>
    %c2_i32 = arith.constant 2 : i32
    %18 = vector.broadcast %c2_i32 : i32 to vector<8x1xi32>
    %19 = arith.muli %8, %18 : vector<8x1xi32>
    %c1_i32 = arith.constant 1 : i32
    %20 = vector.broadcast %c1_i32 : i32 to vector<8x1xi32>
    %21 = arith.addi %19, %20 : vector<8x1xi32>
    %22 = vector.extract_strided_slice %6 {offsets = [0, 0], sizes = [8, 1], strides = [1, 1]} : vector<8x5xi32> to vector<8x1xi32>
    %23 = arith.addi %21, %22 : vector<8x1xi32>
    %24 = vector.extract_strided_slice %3 {offsets = [0, 1], sizes = [8, 1], strides = [1, 1]} : vector<8x5xf32> to vector<8x1xf32>
    %25 = vector.broadcast %23 : vector<8x1xi32> to vector<8x32xi32>
    %26 = arith.cmpi eq, %7, %25 : vector<8x32xi32>
    %27 = arith.extui %26 : vector<8x32xi1> to vector<8x32xi32>
    %28 = arith.sitofp %27 : vector<8x32xi32> to vector<8x32xf32>
    %29 = vector.broadcast %24 : vector<8x1xf32> to vector<8x32xf32>
    %30 = arith.mulf %29, %28 : vector<8x32xf32>
    %31 = arith.addf %17, %30 : vector<8x32xf32>
    %c2_i32_7 = arith.constant 2 : i32
    %32 = vector.broadcast %c2_i32_7 : i32 to vector<8x1xi32>
    %33 = arith.muli %23, %32 : vector<8x1xi32>
    %c1_i32_8 = arith.constant 1 : i32
    %34 = vector.broadcast %c1_i32_8 : i32 to vector<8x1xi32>
    %35 = arith.addi %33, %34 : vector<8x1xi32>
    %36 = vector.extract_strided_slice %6 {offsets = [0, 1], sizes = [8, 1], strides = [1, 1]} : vector<8x5xi32> to vector<8x1xi32>
    %37 = arith.addi %35, %36 : vector<8x1xi32>
    %38 = vector.extract_strided_slice %3 {offsets = [0, 2], sizes = [8, 1], strides = [1, 1]} : vector<8x5xf32> to vector<8x1xf32>
    %39 = vector.broadcast %37 : vector<8x1xi32> to vector<8x32xi32>
    %40 = arith.cmpi eq, %7, %39 : vector<8x32xi32>
    %41 = arith.extui %40 : vector<8x32xi1> to vector<8x32xi32>
    %42 = arith.sitofp %41 : vector<8x32xi32> to vector<8x32xf32>
    %43 = vector.broadcast %38 : vector<8x1xf32> to vector<8x32xf32>
    %44 = arith.mulf %43, %42 : vector<8x32xf32>
    %45 = arith.addf %31, %44 : vector<8x32xf32>
    %c2_i32_9 = arith.constant 2 : i32
    %46 = vector.broadcast %c2_i32_9 : i32 to vector<8x1xi32>
    %47 = arith.muli %37, %46 : vector<8x1xi32>
    %c1_i32_10 = arith.constant 1 : i32
    %48 = vector.broadcast %c1_i32_10 : i32 to vector<8x1xi32>
    %49 = arith.addi %47, %48 : vector<8x1xi32>
    %50 = vector.extract_strided_slice %6 {offsets = [0, 2], sizes = [8, 1], strides = [1, 1]} : vector<8x5xi32> to vector<8x1xi32>
    %51 = arith.addi %49, %50 : vector<8x1xi32>
    %52 = vector.extract_strided_slice %3 {offsets = [0, 3], sizes = [8, 1], strides = [1, 1]} : vector<8x5xf32> to vector<8x1xf32>
    %53 = vector.broadcast %51 : vector<8x1xi32> to vector<8x32xi32>
    %54 = arith.cmpi eq, %7, %53 : vector<8x32xi32>
    %55 = arith.extui %54 : vector<8x32xi1> to vector<8x32xi32>
    %56 = arith.sitofp %55 : vector<8x32xi32> to vector<8x32xf32>
    %57 = vector.broadcast %52 : vector<8x1xf32> to vector<8x32xf32>
    %58 = arith.mulf %57, %56 : vector<8x32xf32>
    %59 = arith.addf %45, %58 : vector<8x32xf32>
    %c2_i32_11 = arith.constant 2 : i32
    %60 = vector.broadcast %c2_i32_11 : i32 to vector<8x1xi32>
    %61 = arith.muli %51, %60 : vector<8x1xi32>
    %c1_i32_12 = arith.constant 1 : i32
    %62 = vector.broadcast %c1_i32_12 : i32 to vector<8x1xi32>
    %63 = arith.addi %61, %62 : vector<8x1xi32>
    %64 = vector.extract_strided_slice %6 {offsets = [0, 3], sizes = [8, 1], strides = [1, 1]} : vector<8x5xi32> to vector<8x1xi32>
    %65 = arith.addi %63, %64 : vector<8x1xi32>
    %66 = vector.extract_strided_slice %3 {offsets = [0, 4], sizes = [8, 1], strides = [1, 1]} : vector<8x5xf32> to vector<8x1xf32>
    %67 = vector.broadcast %65 : vector<8x1xi32> to vector<8x32xi32>
    %68 = arith.cmpi eq, %7, %67 : vector<8x32xi32>
    %69 = arith.extui %68 : vector<8x32xi1> to vector<8x32xi32>
    %70 = arith.sitofp %69 : vector<8x32xi32> to vector<8x32xf32>
    %71 = vector.broadcast %66 : vector<8x1xf32> to vector<8x32xf32>
    %72 = arith.mulf %71, %70 : vector<8x32xf32>
    %73 = arith.addf %59, %72 : vector<8x32xf32>
    %cst_13 = arith.constant dense<0.000000e+00> : vector<8x64xf32>
    %74 = tpu.matmul %73, %2, %cst_13 {dimension_numbers = #tpu.dot_dimension_numbers<[1], [0], [0], [1], [0, 0, 1, 1], [], []>} : vector<8x32xf32>, vector<32x64xf32>, vector<8x64xf32> -> vector<8x64xf32>
    %c0_14 = arith.constant 0 : index
    %c0_15 = arith.constant 0 : index
    %75 = vector.load %arg4[%c0_14, %c0_15] : memref<8x64xf32, #tpu.memory_space<vmem>>, vector<8x64xf32>
    tpu.vector_store %arg4[%c0_14, %c0_15], %74 {strides = array<i32>} : memref<8x64xf32, #tpu.memory_space<vmem>>, vector<8x64xf32>,
    return
  }
  func.func @transform_0(%arg0: i32) -> (i32, i32) {
    %c0_i32 = arith.constant 0 : i32
    %c0_i32_0 = arith.constant 0 : i32
    return %arg0, %c0_i32 : i32, i32
  }
  func.func @transform_1(%arg0: i32) -> (i32, i32) {
    %c0_i32 = arith.constant 0 : i32
    %c0_i32_0 = arith.constant 0 : i32
    %c0_i32_1 = arith.constant 0 : i32
    return %c0_i32, %c0_i32_0 : i32, i32
  }
  func.func @transform_2(%arg0: i32) -> (i32, i32) {
    %c0_i32 = arith.constant 0 : i32
    %c0_i32_0 = arith.constant 0 : i32
    %c0_i32_1 = arith.constant 0 : i32
    return %c0_i32, %c0_i32_0 : i32, i32
  }
  func.func @transform_3(%arg0: i32) -> (i32, i32) {
    %c0_i32 = arith.constant 0 : i32
    %c0_i32_0 = arith.constant 0 : i32
    return %arg0, %c0_i32 : i32, i32
  }
}

</mosaic_0001>

<llo_original>
// kernel: tpu_custom_call.1
$region0: #{tpu_custom_call.1}
  #allocation0 [shape = 'u32[]', space=smem, size = 0x4, offset = 0x4, fixed_abs, tag = 'smem constant byte address 0x4 - core index']
  #allocation1 [shape = 'u32[144,128]{1,0:T(1,128)}', space=vmem, size = 0x12000, scoped, tag = 'internal scratch']
  %s0 = inlined_call_operand.hbm [shape: f32[16,32], index: 0, kind: input, shape index: {}]
  %s1 = inlined_call_operand.vmem [shape: f32[32,5], index: 1, kind: input, shape index: {}]
  %s2 = inlined_call_operand.vmem [shape: f32[32,64], index: 2, kind: input, shape index: {}]
  %s3 = inlined_call_operand.hbm [shape: f32[16,64], index: 3, kind: output, shape index: {}]
  %s4 = sld [smem:[#allocation0]]
  $region49: #{tpu_custom_call.1} parent=0
    _
  %s6 = ssub.s32 1, %s4
  %s7 = scalar_select 0, %s6, %s4
  $region1: #{tpu_custom_call.1} parent=0
    #allocation2 [shape = 'u8[8192]{0}', space=vmem, size = 0x2000, scoped, tag = 'input window, operand 0']
    #allocation3 [shape = 's32[2]{0}', space=sflag, size = 0x8, scoped, tag = 'scoped memory for tpu_custom_call.1']
    #allocation4 [shape = 's32[2]{0}', space=sflag, size = 0x8, scoped, tag = 'scoped memory for tpu_custom_call.1']
    #allocation5 [shape = 'u8[8192]{0}', space=vmem, size = 0x2000, scoped, tag = 'output window, operand 0']
    %8 = vsyncpa [#allocation3], 0
    %s9 = scalar_lea.sflag [#allocation3], 1
    %10 = vsyncpa %s9, 0
    %11 = vsyncpa [#allocation4], 0
    %s12 = scalar_lea.sflag [#allocation4], 1
    %13 = vsyncpa %s12, 0
    loop: start=0, step=1, limit=4
    $region2: #{tpu_custom_call.1} parent=1 // loop_pre_header
      _
    $region3: #{tpu_custom_call.1} parent=1 // loop_header
      %s15 = sphi 0, %s19
      %p16 = scmp.ge.s32.totalorder %s15, 4
      %s25 = sphi 0, %s27
      %s28 = sphi 0, %s25
      %s29 = sphi 0, %s28
      %s45 = sphi 0, %s29
      %s49 = sphi 0, %s49
      %s51 = sphi 0, %s49
      %s52 = sphi 0, %s51
      %s66 = sphi 0, %s52
      %s70 = sphi 0, %s70
      %s72 = sphi 0, %s70
      %s73 = sphi 0, %s72
      %s87 = sphi 0, %s73
      %s93 = sphi 0, %s95
      %s96 = sphi 0, %s93
      %s97 = sphi 0, %s96
      %s113 = sphi 0, %s97
    $region4: #{tpu_custom_call.1} parent=1 // loop_header_branch
      %18 = sbr.rel (%p16) target = $region8
    $region5: #{tpu_custom_call.1} parent=1 // loop_body
      %s20 = ssub.s32 %s15, 1
      %s21 = ssub.s32 %s15, 2
      %s22 = sadd.s32 %s15, 1
      %s23 = ssub.s32 %s15, %s22
      %p24 = scmp.eq.s32.totalorder %s23, 0
      %s26 = sadd.s32 %s25, 1
      %s27 = scalar_select %p24, %s25, %s26
      %p30 = pneg %p24
      %p31 = scmp.eq.s32.totalorder %s15, 1
      %p32 = por %p30, %p31
      %p33 = scmp.ne.s32.totalorder %s25, %s28
      %p34 = scmp.eq.s32.totalorder %s15, 0
      %p35 = por %p33, %p34
      %p36 = scmp.ne.s32.totalorder %s25, %s28
      %p37 = scmp.eq.s32.totalorder %s20, 1
      %p38 = por %p36, %p37
      %p39 = scmp.ne.s32.totalorder %s28, %s29
      %p40 = scmp.eq.s32.totalorder %s20, 0
      %p41 = por %p39, %p40
      %p42 = scmp.ne.s32.totalorder %s28, %s29
      %p43 = scmp.eq.s32.totalorder %s21, 1
      %p44 = por %p42, %p43
      %p46 = scmp.ne.s32.totalorder %s29, %s45
      %p47 = scmp.eq.s32.totalorder %s21, 0
      %p48 = por %p46, %p47
      %s50 = sadd.s32 %s49, 1
      %p53 = scmp.eq.s32.totalorder %s15, 1
      %p54 = scmp.ne.s32.totalorder %s49, %s51
      %p55 = scmp.eq.s32.totalorder %s15, 0
      %p56 = por %p54, %p55
      %p57 = scmp.ne.s32.totalorder %s49, %s51
      %p58 = scmp.eq.s32.totalorder %s20, 1
      %p59 = por %p57, %p58
      %p60 = scmp.ne.s32.totalorder %s51, %s52
      %p61 = scmp.eq.s32.totalorder %s20, 0
      %p62 = por %p60, %p61
      %p63 = scmp.ne.s32.totalorder %s51, %s52
      %p64 = scmp.eq.s32.totalorder %s21, 1
      %p65 = por %p63, %p64
      %p67 = scmp.ne.s32.totalorder %s52, %s66
      %p68 = scmp.eq.s32.totalorder %s21, 0
      %p69 = por %p67, %p68
      %s71 = sadd.s32 %s70, 1
      %p74 = scmp.eq.s32.totalorder %s15, 1
      %p75 = scmp.ne.s32.totalorder %s70, %s72
      %p76 = scmp.eq.s32.totalorder %s15, 0
      %p77 = por %p75, %p76
      %p78 = scmp.ne.s32.totalorder %s70, %s72
      %p79 = scmp.eq.s32.totalorder %s20, 1
      %p80 = por %p78, %p79
      %p81 = scmp.ne.s32.totalorder %s72, %s73
      %p82 = scmp.eq.s32.totalorder %s20, 0
      %p83 = por %p81, %p82
      %p84 = scmp.ne.s32.totalorder %s72, %s73
      %p85 = scmp.eq.s32.totalorder %s21, 1
      %p86 = por %p84, %p85
      %p88 = scmp.ne.s32.totalorder %s73, %s87
      %p89 = scmp.eq.s32.totalorder %s21, 0
      %p90 = por %p88, %p89
      %s91 = ssub.s32 %s15, %s22
      %p92 = scmp.eq.s32.totalorder %s91, 0
      %s94 = sadd.s32 %s93, 1
      %s95 = scalar_select %p92, %s93, %s94
      %p98 = pneg %p92
      %p99 = scmp.eq.s32.totalorder %s15, 1
      %p100 = por %p98, %p99
      %p101 = scmp.ne.s32.totalorder %s93, %s96
      %p102 = scmp.eq.s32.totalorder %s15, 0
      %p103 = por %p101, %p102
      %p104 = scmp.ne.s32.totalorder %s93, %s96
      %p105 = scmp.eq.s32.totalorder %s20, 1
      %p106 = por %p104, %p105
      %p107 = scmp.ne.s32.totalorder %s96, %s97
      %p108 = scmp.eq.s32.totalorder %s20, 0
      %p109 = por %p107, %p108
      %p110 = scmp.ne.s32.totalorder %s96, %s97
      %p111 = scmp.eq.s32.totalorder %s21, 1
      %p112 = por %p110, %p111
      %p114 = scmp.ne.s32.totalorder %s97, %s113
      %p115 = scmp.eq.s32.totalorder %s21, 0
      %p116 = por %p114, %p115
      %p117 = scmp.le.s32.totalorder 1, %s15
      %p118 = scmp.lt.s32.totalorder %s15, 3
      %p119 = pnand %p117, %p118
      %p120 = pneg %p119
      // Predicated region
      $region9: #{tpu_custom_call.1} parent=5 // pred_check
        _
      $region10: #{tpu_custom_call.1} parent=5 // pred_check_branch
        %122 = sbr.rel (%p119) target = $region12
      $region11: #{tpu_custom_call.1} parent=5 // pred_region
        %s123 = ssub.s32 %s15, 1
        // Predicated region
        $region13: #{tpu_custom_call.1} parent=11 // pred_check
          %p124 = pneg %p62
        $region14: #{tpu_custom_call.1} parent=11 // pred_check_branch
          %126 = sbr.rel (%p124) target = $region16
        $region15: #{tpu_custom_call.1} parent=11 // pred_region
          _
        $region16: #{tpu_custom_call.1} parent=11 // pred_fallthru
          _
        // Predicated region
        $region17: #{tpu_custom_call.1} parent=11 // pred_check
          %p127 = pneg %p83
        $region18: #{tpu_custom_call.1} parent=11 // pred_check_branch
          %129 = sbr.rel (%p127) target = $region20
        $region19: #{tpu_custom_call.1} parent=11 // pred_region
          _
        $region20: #{tpu_custom_call.1} parent=11 // pred_fallthru
          _
      $region12: #{tpu_custom_call.1} parent=5 // pred_fallthru
        _
      %p130 = scmp.lt.s32.totalorder %s15, 2
      // Predicated region
      $region21: #{tpu_custom_call.1} parent=5 // pred_check
        %p131 = pneg %p130
      $region22: #{tpu_custom_call.1} parent=5 // pred_check_branch
        %133 = sbr.rel (%p131) target = $region24
      $region23: #{tpu_custom_call.1} parent=5 // pred_region
        // Predicated region
        $region25: #{tpu_custom_call.1} parent=23 // pred_check
          %p134 = pneg %p35
        $region26: #{tpu_custom_call.1} parent=23 // pred_check_branch
          %136 = sbr.rel (%p134) target = $region28
        $region27: #{tpu_custom_call.1} parent=23 // pred_region
          %s137 = sand.u32 %s25, 1
          %s138 = scalar_lea.sflag [#allocation3], %s137
          %s139 = sand.u32 %s25, 1
          %s140 = smul.addr %s139, 8
          %s141 = scalar_lea.vmem [#allocation2], %s140
          %s143 = ssub.s32 128, 128
          %144 = vsyncadd %s138, %s143
          %s145 = smul.addr %s15, 128
          %s146 = scalar_lea.hbm %s0, %s145
          %s148 = sshll.u32 %s141, 4
          %s149 = int_to_ptr.vmem [resolvable:$true] %s148
          %151 = dma.hbm_to_vmem [thread:$0]  %s146, 128, %s149, %s138
        $region28: #{tpu_custom_call.1} parent=23 // pred_fallthru
          _
      $region24: #{tpu_custom_call.1} parent=5 // pred_fallthru
        _
      %p152 = scmp.le.s32.totalorder 1, %s15
      %p153 = scmp.lt.s32.totalorder %s15, 3
      %p154 = pnand %p152, %p153
      %p155 = pneg %p154
      // Predicated region
      $region29: #{tpu_custom_call.1} parent=5 // pred_check
        _
      $region30: #{tpu_custom_call.1} parent=5 // pred_check_branch
        %157 = sbr.rel (%p154) target = $region32
      $region31: #{tpu_custom_call.1} parent=5 // pred_region
        %s158 = ssub.s32 %s15, 1
        %s159 = sand.u32 %s28, 1
        %s160 = scalar_lea.sflag [#allocation3], %s159
        %s161 = sand.u32 %s28, 1
        %s162 = smul.addr %s161, 8
        %s163 = scalar_lea.vmem [#allocation2], %s162
        // Predicated region
        $region33: #{tpu_custom_call.1} parent=31 // pred_check
          %p164 = pneg %p41
        $region34: #{tpu_custom_call.1} parent=31 // pred_check_branch
          %166 = sbr.rel (%p164) target = $region36
        $region35: #{tpu_custom_call.1} parent=31 // pred_region
          %167 = dma.done %s160, 128
        $region36: #{tpu_custom_call.1} parent=31 // pred_fallthru
          _
        %s168 = sand.u32 %s28, 1
        %s169 = scalar_lea.sflag [#allocation3], %s168
        %s170 = sand.u32 %s28, 1
        %s171 = smul.addr %s170, 8
        %s172 = scalar_lea.vmem [#allocation2], %s171
        %p173 = pneg %p41
        %p174 = pneg %p38
        %p175 = pneg %p62
        %p176 = pneg %p59
        %p177 = pneg %p83
        %p178 = pneg %p80
        %p179 = pneg %p109
        %p180 = pneg %p106
        %s181 = sand.u32 %s96, 1
        %s182 = scalar_lea.sflag [#allocation4], %s181
        %s183 = sand.u32 %s96, 1
        %s184 = smul.addr %s183, 8
        %s185 = scalar_lea.vmem [#allocation5], %s184
        %v186 = vld [vmem:[%s163] sm:$0xff]
        %v187 = vld [vmem:[%s1] sm:$0xff]
        %v188 = vld [vmem:[%s1 + $0x8] sm:$0xff]
        %v189 = vld [vmem:[%s1 + $0x10] sm:$0xff]
        %v190 = vld [vmem:[%s1 + $0x18] sm:$0xff]
        %v191 = vld [vmem:[%s2] sm:$0xff]
        %v192 = vld [vmem:[%s2 + $0x8] sm:$0xff]
        %v193 = vld [vmem:[%s2 + $0x10] sm:$0xff]
        %v194 = vld [vmem:[%s2 + $0x18] sm:$0xff]
        %vm195 = vcmask 261120
        %v197 = vsel %vm195, %v186, 0
        %199 = vmatprep.subr.mxu0 0.0
        %200 = vmatpush1.msra.mxu0 %v187
        %201 = vmatprep.subr.mxu0 0.0
        %202 = vmatpush1.msra.mxu0 %v188
        %203 = vmatprep.subr.mxu0 0.0
        %204 = vmatpush1.msra.mxu0 %v189
        %205 = vmatprep.subr.mxu0 0.0
        %206 = vmatpush1.msra.mxu0 %v190
        %207 = vmatprep.subr.mxu0 0.0
        %208 = vmatpush1.msra.mxu0 0.0
        %209 = vmatprep.subr.mxu0 0.0
        %210 = vmatpush1.msra.mxu0 0.0
        %211 = vmatprep.subr.mxu0 0.0
        %212 = vmatpush1.msra.mxu0 0.0
        %213 = vmatprep.subr.mxu0 0.0
        %214 = vmatpush1.msra.mxu0 0.0
        %215 = vmatprep.subr.mxu0 0.0
        %216 = vmatpush1.msra.mxu0 0.0
        %217 = vmatprep.subr.mxu0 0.0
        %218 = vmatpush1.msra.mxu0 0.0
        %219 = vmatprep.subr.mxu0 0.0
        %220 = vmatpush1.msra.mxu0 0.0
        %221 = vmatprep.subr.mxu0 0.0
        %222 = vmatpush1.msra.mxu0 0.0
        %223 = vmatprep.subr.mxu0 0.0
        %224 = vmatpush1.msra.mxu0 0.0
        %225 = vmatprep.subr.mxu0 0.0
        %226 = vmatpush1.msra.mxu0 0.0
        %227 = vmatprep.subr.mxu0 0.0
        %228 = vmatpush1.msra.mxu0 0.0
        %229 = vmatprep.subr.mxu0 0.0
        %230 = vmatpush1.msra.mxu0 0.0
        %231 = vmatprep.subr.mxu0 0.0
        %232 = vmatpush1.msra.mxu0 0.0
        %233 = vmatprep.subr.mxu0 0.0
        %234 = vmatpush1.msra.mxu0 0.0
        %235 = vmatprep.subr.mxu0 0.0
        %236 = vmatpush1.msra.mxu0 0.0
        %237 = vmatprep.subr.mxu0 0.0
        %238 = vmatpush1.msra.mxu0 0.0
        %239 = vmatprep.subr.mxu0 0.0
        %240 = vmatpush1.msra.mxu0 0.0
        %241 = vmatprep.subr.mxu0 0.0
        %242 = vmatpush1.msra.mxu0 0.0
        %243 = vmatprep.subr.mxu0 0.0
        %244 = vmatpush1.msra.mxu0 0.0
        %245 = vmatprep.subr.mxu0 0.0
        %246 = vmatpush1.msra.mxu0 0.0
        %247 = vmatprep.subr.mxu0 0.0
        %248 = vmatpush1.msra.mxu0 0.0
        %249 = vmatprep.subr.mxu0 0.0
        %250 = vmatpush1.msra.mxu0 0.0
        %251 = vmatprep.subr.mxu0 0.0
        %252 = vmatpush1.msra.mxu0 0.0
        %253 = vmatprep.subr.mxu0 0.0
        %254 = vmatpush1.msra.mxu0 0.0
        %255 = vmatprep.subr.mxu0 0.0
        %256 = vmatpush1.msra.mxu0 0.0
        %257 = vmatprep.subr.mxu0 0.0
        %258 = vmatpush1.msra.mxu0 0.0
        %259 = vmatprep.subr.mxu0 0.0
        %260 = vmatpush1.msra.mxu0 0.0
        %261 = vmatprep.subr.mxu0 0.0
        %262 = vmatpush1.msra.mxu0 0.0
        %263 = vmatprep.mubr.f32.mxu0 0.0
        %264 = vmatmul.mubr.f32.gmra.mrb[0].mxu0 %v197
        %v265 = vpop.f32.mrb[0].mxu0
        %v266 = vadd.f32 0.0, %v265
        %v267 = vpop.f32.mrb[0].mxu0
        %268 = vdwg.mxu0
        %vm269 = vcmp.gt.f32.partialorder %v266, 0.0
        %v270 = vsel %vm269, 1, 0
        %v271 = vlaneseq
        %v272 = vand.u32 %v271, 127
        %vm273 = vcmp.eq.s32.totalorder %v272, 0
        %v274 = vsel %vm273, 1, 0
        %v275 = vcvt.s32.f32 %v274
        %277 = vset.pattern.permute.xlu0 0
        %278 = vperm.xlu0 %277, %v266
        %v279 = vpop.permute.xlu0 %278
        %v281 = vmul.f32 %v279, %v275
        %v282 = vadd.f32 %v281, 0.0
        %v283 = vadd.s32 %v270, 1
        %284 = vset.pattern.permute.xlu0 0
        %285 = vperm.xlu0 %284, %v283
        %v286 = vpop.permute.xlu0 %285
        %vm287 = vcmp.eq.s32.totalorder %v272, %v286
        %v288 = vsel %vm287, 1, 0
        %v289 = vcvt.s32.f32 %v288
        %290 = vset.pattern.permute.xlu0 1
        %291 = vperm.xlu0 %290, %v266
        %v292 = vpop.permute.xlu0 %291
        %v294 = vmul.f32 %v292, %v289
        %v295 = vadd.f32 %v282, %v294
        %v296 = vmul.u32 %v283, 2
        %v297 = vadd.s32 %v296, 1
        %298 = vrot.lane.b32.xlu0 %v270, 127
        %v299 = vpop.permute.xlu0 %298
        %v300 = vadd.s32 %v297, %v299
        %301 = vset.pattern.permute.xlu0 0
        %302 = vperm.xlu0 %301, %v300
        %v303 = vpop.permute.xlu0 %302
        %vm304 = vcmp.eq.s32.totalorder %v272, %v303
        %v305 = vsel %vm304, 1, 0
        %v306 = vcvt.s32.f32 %v305
        %307 = vset.pattern.permute.xlu0 2
        %308 = vperm.xlu0 %307, %v266
        %v309 = vpop.permute.xlu0 %308
        %v311 = vmul.f32 %v309, %v306
        %v312 = vadd.f32 %v295, %v311
        %v313 = vmul.u32 %v300, 2
        %v314 = vadd.s32 %v313, 1
        %315 = vrot.lane.b32.xlu0 %v270, 126
        %v316 = vpop.permute.xlu0 %315
        %v317 = vadd.s32 %v314, %v316
        %318 = vset.pattern.permute.xlu0 0
        %319 = vperm.xlu0 %318, %v317
        %v320 = vpop.permute.xlu0 %319
        %vm321 = vcmp.eq.s32.totalorder %v272, %v320
        %v322 = vsel %vm321, 1, 0
        %v323 = vcvt.s32.f32 %v322
        %324 = vset.pattern.permute.xlu0 3
        %325 = vperm.xlu0 %324, %v266
        %v326 = vpop.permute.xlu0 %325
        %v328 = vmul.f32 %v326, %v323
        %v329 = vadd.f32 %v312, %v328
        %v330 = vmul.u32 %v317, 2
        %v331 = vadd.s32 %v330, 1
        %332 = vrot.lane.b32.xlu0 %v270, 125
        %v333 = vpop.permute.xlu0 %332
        %v334 = vadd.s32 %v331, %v333
        %335 = vset.pattern.permute.xlu0 0
        %336 = vperm.xlu0 %335, %v334
        %v337 = vpop.permute.xlu0 %336
        %vm338 = vcmp.eq.s32.totalorder %v272, %v337
        %v339 = vsel %vm338, 1, 0
        %v340 = vcvt.s32.f32 %v339
        %341 = vset.pattern.permute.xlu0 4
        %342 = vperm.xlu0 %341, %v266
        %v343 = vpop.permute.xlu0 %342
        %v345 = vmul.f32 %v343, %v340
        %v346 = vadd.f32 %v329, %v345
        %v348 = vsel %vm195, %v346, 0
        %350 = vmatprep.subr.mxu0 0.0
        %351 = vmatpush1.msra.mxu0 %v191
        %352 = vmatprep.subr.mxu0 0.0
        %353 = vmatpush1.msra.mxu0 %v192
        %354 = vmatprep.subr.mxu0 0.0
        %355 = vmatpush1.msra.mxu0 %v193
        %356 = vmatprep.subr.mxu0 0.0
        %357 = vmatpush1.msra.mxu0 %v194
        %358 = vmatprep.subr.mxu0 0.0
        %359 = vmatpush1.msra.mxu0 0.0
        %360 = vmatprep.subr.mxu0 0.0
        %361 = vmatpush1.msra.mxu0 0.0
        %362 = vmatprep.subr.mxu0 0.0
        %363 = vmatpush1.msra.mxu0 0.0
        %364 = vmatprep.subr.mxu0 0.0
        %365 = vmatpush1.msra.mxu0 0.0
        %366 = vmatprep.subr.mxu0 0.0
        %367 = vmatpush1.msra.mxu0 0.0
        %368 = vmatprep.subr.mxu0 0.0
        %369 = vmatpush1.msra.mxu0 0.0
        %370 = vmatprep.subr.mxu0 0.0
        %371 = vmatpush1.msra.mxu0 0.0
        %372 = vmatprep.subr.mxu0 0.0
        %373 = vmatpush1.msra.mxu0 0.0
        %374 = vmatprep.subr.mxu0 0.0
        %375 = vmatpush1.msra.mxu0 0.0
        %376 = vmatprep.subr.mxu0 0.0
        %377 = vmatpush1.msra.mxu0 0.0
        %378 = vmatprep.subr.mxu0 0.0
        %379 = vmatpush1.msra.mxu0 0.0
        %380 = vmatprep.subr.mxu0 0.0
        %381 = vmatpush1.msra.mxu0 0.0
        %382 = vmatprep.subr.mxu0 0.0
        %383 = vmatpush1.msra.mxu0 0.0
        %384 = vmatprep.subr.mxu0 0.0
        %385 = vmatpush1.msra.mxu0 0.0
        %386 = vmatprep.subr.mxu0 0.0
        %387 = vmatpush1.msra.mxu0 0.0
        %388 = vmatprep.subr.mxu0 0.0
        %389 = vmatpush1.msra.mxu0 0.0
        %390 = vmatprep.subr.mxu0 0.0
        %391 = vmatpush1.msra.mxu0 0.0
        %392 = vmatprep.subr.mxu0 0.0
        %393 = vmatpush1.msra.mxu0 0.0
        %394 = vmatprep.subr.mxu0 0.0
        %395 = vmatpush1.msra.mxu0 0.0
        %396 = vmatprep.subr.mxu0 0.0
        %397 = vmatpush1.msra.mxu0 0.0
        %398 = vmatprep.subr.mxu0 0.0
        %399 = vmatpush1.msra.mxu0 0.0
        %400 = vmatprep.subr.mxu0 0.0
        %401 = vmatpush1.msra.mxu0 0.0
        %402 = vmatprep.subr.mxu0 0.0
        %403 = vmatpush1.msra.mxu0 0.0
        %404 = vmatprep.subr.mxu0 0.0
        %405 = vmatpush1.msra.mxu0 0.0
        %406 = vmatprep.subr.mxu0 0.0
        %407 = vmatpush1.msra.mxu0 0.0
        %408 = vmatprep.subr.mxu0 0.0
        %409 = vmatpush1.msra.mxu0 0.0
        %410 = vmatprep.subr.mxu0 0.0
        %411 = vmatpush1.msra.mxu0 0.0
        %412 = vmatprep.subr.mxu0 0.0
        %413 = vmatpush1.msra.mxu0 0.0
        %414 = vmatprep.mubr.f32.mxu0 0.0
        %415 = vmatmul.mubr.f32.gmra.mrb[0].mxu0 %v348
        %v416 = vpop.f32.mrb[0].mxu0
        %v417 = vadd.f32 0.0, %v416
        %v418 = vpop.f32.mrb[0].mxu0
        %419 = vdwg.mxu0
        %vm420 = vcmask 523264
        %421 = vst.msk [vmem:[%s185] sm:$0xff] %vm420, %v417
        %s422 = sand.u32 %s96, 1
        %s423 = scalar_lea.sflag [#allocation4], %s422
        %s424 = sand.u32 %s96, 1
        %s425 = smul.addr %s424, 8
        %s426 = scalar_lea.vmem [#allocation5], %s425
        // Predicated region
        $region37: #{tpu_custom_call.1} parent=31 // pred_check
          %p427 = pneg %p106
        $region38: #{tpu_custom_call.1} parent=31 // pred_check_branch
          %429 = sbr.rel (%p427) target = $region40
        $region39: #{tpu_custom_call.1} parent=31 // pred_region
          %s431 = ssub.s32 128, 128
          %432 = vsyncadd %s423, %s431
          %s433 = smul.addr %s20, 128
          %s434 = scalar_lea.hbm %s3, %s433
          %s436 = sshll.u32 %s426, 4
          %s437 = int_to_ptr.vmem [resolvable:$true] %s436
          %439 = dma.vmem_to_hbm [thread:$0]  %s437, 128, %s434, %s423
        $region40: #{tpu_custom_call.1} parent=31 // pred_fallthru
          _
      $region32: #{tpu_custom_call.1} parent=5 // pred_fallthru
        _
      %p440 = scmp.le.s32.totalorder 2, %s15
      // Predicated region
      $region41: #{tpu_custom_call.1} parent=5 // pred_check
        %p441 = pneg %p440
      $region42: #{tpu_custom_call.1} parent=5 // pred_check_branch
        %443 = sbr.rel (%p441) target = $region44
      $region43: #{tpu_custom_call.1} parent=5 // pred_region
        %s444 = ssub.s32 %s15, 2
        // Predicated region
        $region45: #{tpu_custom_call.1} parent=43 // pred_check
          %p445 = pneg %p112
        $region46: #{tpu_custom_call.1} parent=43 // pred_check_branch
          %447 = sbr.rel (%p445) target = $region48
        $region47: #{tpu_custom_call.1} parent=43 // pred_region
          %s448 = sand.u32 %s97, 1
          %s449 = scalar_lea.sflag [#allocation4], %s448
          %s450 = sand.u32 %s97, 1
          %s451 = smul.addr %s450, 8
          %s452 = scalar_lea.vmem [#allocation5], %s451
          %453 = dma.done %s449, 128
        $region48: #{tpu_custom_call.1} parent=43 // pred_fallthru
          _
      $region44: #{tpu_custom_call.1} parent=5 // pred_fallthru
        _
    $region6: #{tpu_custom_call.1} parent=1 // loop_footer
      %s19 = sadd.s32 1, %s15
    $region7: #{tpu_custom_call.1} parent=1 // loop_footer_branch
      %14 = sbr.rel target = $region3
    $region8: #{tpu_custom_call.1} parent=1 // loop_exit
      _
    %454 = vsyncpa [#allocation3], 1
    %s455 = scalar_lea.sflag [#allocation3], 1
    %456 = vsyncpa %s455, 1
    %457 = vsyncpa [#allocation4], 1
    %s458 = scalar_lea.sflag [#allocation4], 1
    %459 = vsyncpa %s458, 1

</llo_original>
